<compile_context>
chip_gen: v5e
topology: v5e:2x2
jax: 0.10.0
libtpu: 0.0.40
codegen_flags: <defaults>
</compile_context>

<pallas_src>
import functools

import jax
import jax.numpy as jnp
from jax import lax
from jax.experimental import pallas as pl
from jax.experimental.pallas import tpu as pltpu

PADDED_P = 128          # lane-aligned projection width (real P=64, zero-padded)
ATTN_SCALE = 8.0        # the module hard-codes division by 8.0 (not sqrt(P))


def mha_kernel(x_ref, wqkv_ref, wo_ref, o_ref, *, pp):
    # Leading batch dim is squeezed by the BlockSpec: x_ref is [S, W].
    x = x_ref[...]

    # Fused (pre-scaled) Q|K|V projection: one MXU push, [S, 3*pp] output.
    qkv = jnp.dot(x, wqkv_ref[...], preferred_element_type=jnp.float32)

    # 128-lane-aligned slices (pp == 128): full vregs, no lane shuffles.
    q = qkv[:, :pp]
    k = qkv[:, pp:2 * pp]
    v = qkv[:, 2 * pp:]

    # Logits: q @ k^T (1/8 scale already folded into W_Q at prep time).
    s = lax.dot_general(q, k, (((1,), (1,)), ((), ())),
                        preferred_element_type=jnp.float32)          # [S, S]

    # Row softmax (torch.nn.Softmax(dim=1)), f32, reciprocal-multiply.
    m = jnp.max(s, axis=-1, keepdims=True)
    e = jnp.exp(s - m)
    denom = jnp.sum(e, axis=-1, keepdims=True)
    p = e * (1.0 / denom)

    attn = jnp.dot(p, v, preferred_element_type=jnp.float32)         # [S, pp]

    # Shared-weight heads => head-summed output projection, applied once.
    o_ref[...] = jnp.dot(attn, wo_ref[...],
                         preferred_element_type=jnp.float32).astype(o_ref.dtype)


def prepare_mha_weights(w_q, w_k, w_v, w_o, *, num_heads,
                        attn_scale=ATTN_SCALE, padded_p=PADDED_P):
    """One-time (init-time) weight preparation -- NOT in the per-call path."""
    W, P = w_q.shape
    assert w_o.shape == (num_heads * P, W)
    pad = padded_p - P

    def pad_cols(w):  # [W, P] -> [W, padded_p], zero columns are exact no-ops
        return jnp.pad(w, ((0, 0), (0, pad)))

    # Fold the module's hard-coded 1/8.0 logit scale into W_Q (exact: pow2).
    w_qkv = jnp.concatenate(
        [pad_cols(w_q / attn_scale), pad_cols(w_k), pad_cols(w_v)], axis=1)   # [W, 3*padded_p]

    # Identical heads: concat(attn x H) @ W_O == attn @ sum_h W_O[hP:(h+1)P].
    w_o_folded = w_o.reshape(num_heads, P, W).sum(axis=0)                     # [P, W]
    w_o_folded = jnp.pad(w_o_folded, ((0, pad), (0, 0)))                      # [padded_p, W]

    return w_qkv, w_o_folded


def multiheaded_attention(x, w_qkv, w_o_folded):
    """x: [B, S, W] batch of sequences; weights come from prepare_mha_weights."""
    assert x.ndim == 3
    B, S, W = x.shape
    pp3 = w_qkv.shape[1]
    pp = pp3 // 3
    assert w_o_folded.shape == (pp, W)

    kernel = functools.partial(mha_kernel, pp=pp)

    return pl.pallas_call(
        kernel,
        out_shape=jax.ShapeDtypeStruct((B, S, W), jnp.float32),
        grid=(B,),
        in_specs=[
            # One sequence per grid step; leading batch dim squeezed away.
            pl.BlockSpec((None, S, W), lambda b: (b, 0, 0)),
            # Weights: same block for every grid step -> stay VMEM-resident.
            pl.BlockSpec((W, pp3), lambda b: (0, 0)),
            pl.BlockSpec((pp, W), lambda b: (0, 0)),
        ],
        out_specs=pl.BlockSpec((None, S, W), lambda b: (b, 0, 0)),
        compiler_params=pltpu.CompilerParams(
            # Batch axis is independent -> shards across both TCs on v7x.
            dimension_semantics=("parallel",)),
    )(x, w_qkv, w_o_folded)


def multiheaded_attention_ref(x, w_q, w_k, w_v, w_o, *, num_heads):
    """Pure-JAX reference mirroring the PyTorch module exactly (per sequence)."""
    def one_seq(words):
        q = words @ w_q
        k = words @ w_k
        v = words @ w_v
        s = jax.nn.softmax((q @ k.T) / 8.0, axis=1)
        attn = s @ v
        concat = jnp.concatenate([attn] * num_heads, axis=1)  # identical heads
        return concat @ w_o
    return jax.vmap(one_seq)(x)


if __name__ == "__main__":
    num_words = 8          # sequence length (module uses a small [num_words, 512] input)
    word_width = 512
    projection_width = 64
    num_heads = 8
    scale_factor = 100.0
    batch = 4              # batch of independent sequences, one grid step each

    key = jax.random.PRNGKey(0)
    kx, kq, kk, kv, ko = jax.random.split(key, 5)

    x = jax.random.normal(kx, (batch, num_words, word_width), dtype=jnp.float32)
    W_Q = jax.random.normal(kq, (word_width, projection_width), dtype=jnp.float32) / scale_factor
    W_K = jax.random.normal(kk, (word_width, projection_width), dtype=jnp.float32) / scale_factor
    W_V = jax.random.normal(kv, (word_width, projection_width), dtype=jnp.float32) / scale_factor
    W_O = jax.random.normal(ko, (num_heads * projection_width, word_width),
                            dtype=jnp.float32) / scale_factor

    # Init-time weight prep (hoisted out of the forward path).
    w_qkv, w_o_folded = prepare_mha_weights(W_Q, W_K, W_V, W_O, num_heads=num_heads)
    w_qkv, w_o_folded = jax.block_until_ready((w_qkv, w_o_folded))

    out = multiheaded_attention(x, w_qkv, w_o_folded)
    out = jax.block_until_ready(out)

    ref = multiheaded_attention_ref(x, W_Q, W_K, W_V, W_O, num_heads=num_heads)
    assert out.shape == (batch, num_words, word_width)
    assert jnp.allclose(out, ref, atol=1e-4, rtol=1e-4), "mismatch vs reference"

    print("KERNEL_OK")
</pallas_src>

<mosaic_0001>
module attributes {stable_mosaic.version = 11 : i64} {
  func.func @mha_kernel(%arg0: i32, %arg1: memref<1x8x512xf32, #tpu.memory_space<vmem>>, %arg2: memref<512x384xf32, #tpu.memory_space<vmem>>, %arg3: memref<128x512xf32, #tpu.memory_space<vmem>>, %arg4: memref<1x8x512xf32, #tpu.memory_space<vmem>>) attributes {dimension_semantics = [#tpu.dimension_semantics<parallel>], iteration_bounds = array<i64: 4>, scalar_prefetch = 0 : i64, scratch_operands = 0 : i64, tpu.core_type = #tpu.core_type<tc>, window_params = [{transform_indices = @transform_0, window_bounds = array<i64: 1, 8, 512>}, {pipeline_mode = #tpu.pipeline_mode<synchronous>, transform_indices = @transform_1, window_bounds = array<i64: 512, 384>}, {pipeline_mode = #tpu.pipeline_mode<synchronous>, transform_indices = @transform_2, window_bounds = array<i64: 128, 512>}, {transform_indices = @transform_3, window_bounds = array<i64: 1, 8, 512>}]} {
    %c0 = arith.constant 0 : index
    %c0_0 = arith.constant 0 : index
    %c0_1 = arith.constant 0 : index
    %0 = vector.load %arg1[%c0, %c0_0, %c0_1] : memref<1x8x512xf32, #tpu.memory_space<vmem>>, vector<1x8x512xf32>
    %1 = vector.shape_cast %0 : vector<1x8x512xf32> to vector<8x512xf32>
    %c0_2 = arith.constant 0 : index
    %c0_3 = arith.constant 0 : index
    %2 = vector.load %arg2[%c0_2, %c0_3] : memref<512x384xf32, #tpu.memory_space<vmem>>, vector<512x384xf32>
    %cst = arith.constant dense<0.000000e+00> : vector<8x384xf32>
    %3 = tpu.matmul %1, %2, %cst {dimension_numbers = #tpu.dot_dimension_numbers<[1], [0], [0], [1], [0, 0, 1, 1], [], []>} : vector<8x512xf32>, vector<512x384xf32>, vector<8x384xf32> -> vector<8x384xf32>
    %4 = vector.extract_strided_slice %3 {offsets = [0, 0], sizes = [8, 128], strides = [1, 1]} : vector<8x384xf32> to vector<8x128xf32>
    %5 = vector.extract_strided_slice %3 {offsets = [0, 128], sizes = [8, 128], strides = [1, 1]} : vector<8x384xf32> to vector<8x128xf32>
    %6 = vector.extract_strided_slice %3 {offsets = [0, 256], sizes = [8, 128], strides = [1, 1]} : vector<8x384xf32> to vector<8x128xf32>
    %cst_4 = arith.constant dense<0.000000e+00> : vector<8x8xf32>
    %7 = tpu.matmul %4, %5, %cst_4 {dimension_numbers = #tpu.dot_dimension_numbers<[1], [1], [0], [0], [0, 0, 1, 0], [], []>} : vector<8x128xf32>, vector<8x128xf32>, vector<8x8xf32> -> vector<8x8xf32>
    %cst_5 = arith.constant dense<0xFF800000> : vector<8xf32>
    %8 = vector.multi_reduction <maximumf>, %7, %cst_5 [1] : vector<8x8xf32> to vector<8xf32>
    %9 = vector.shape_cast %8 : vector<8xf32> to vector<8x1xf32>
    %10 = vector.broadcast %9 : vector<8x1xf32> to vector<8x8xf32>
    %11 = arith.subf %7, %10 : vector<8x8xf32>
    %12 = math.exp %11 : vector<8x8xf32>
    %cst_6 = arith.constant dense<0.000000e+00> : vector<8xf32>
    %13 = vector.multi_reduction <add>, %12, %cst_6 [1] : vector<8x8xf32> to vector<8xf32>
    %14 = vector.shape_cast %13 : vector<8xf32> to vector<8x1xf32>
    %cst_7 = arith.constant 1.000000e+00 : f32
    %15 = vector.broadcast %cst_7 : f32 to vector<8x1xf32>
    %16 = arith.divf %15, %14 : vector<8x1xf32>
    %17 = vector.broadcast %16 : vector<8x1xf32> to vector<8x8xf32>
    %18 = arith.mulf %12, %17 : vector<8x8xf32>
    %cst_8 = arith.constant dense<0.000000e+00> : vector<8x128xf32>
    %19 = tpu.matmul %18, %6, %cst_8 {dimension_numbers = #tpu.dot_dimension_numbers<[1], [0], [0], [1], [0, 0, 1, 1], [], []>} : vector<8x8xf32>, vector<8x128xf32>, vector<8x128xf32> -> vector<8x128xf32>
    %c0_9 = arith.constant 0 : index
    %c0_10 = arith.constant 0 : index
    %20 = vector.load %arg3[%c0_9, %c0_10] : memref<128x512xf32, #tpu.memory_space<vmem>>, vector<128x512xf32>
    %cst_11 = arith.constant dense<0.000000e+00> : vector<8x512xf32>
    %21 = tpu.matmul %19, %20, %cst_11 {dimension_numbers = #tpu.dot_dimension_numbers<[1], [0], [0], [1], [0, 0, 1, 1], [], []>} : vector<8x128xf32>, vector<128x512xf32>, vector<8x512xf32> -> vector<8x512xf32>
    %c0_12 = arith.constant 0 : index
    %c0_13 = arith.constant 0 : index
    %c0_14 = arith.constant 0 : index
    %22 = vector.load %arg4[%c0_12, %c0_13, %c0_14] : memref<1x8x512xf32, #tpu.memory_space<vmem>>, vector<1x8x512xf32>
    %23 = vector.shape_cast %22 : vector<1x8x512xf32> to vector<8x512xf32>
    %24 = vector.shape_cast %21 : vector<8x512xf32> to vector<1x8x512xf32>
    tpu.vector_store %arg4[%c0_12, %c0_13, %c0_14], %24 {strides = array<i32>} : memref<1x8x512xf32, #tpu.memory_space<vmem>>, vector<1x8x512xf32>,
    return
  }
  func.func @transform_0(%arg0: i32) -> (i32, i32, i32) {
    %c0_i32 = arith.constant 0 : i32
    %c0_i32_0 = arith.constant 0 : i32
    %c0_i32_1 = arith.constant 0 : i32
    return %arg0, %c0_i32, %c0_i32_0 : i32, i32, i32
  }
  func.func @transform_1(%arg0: i32) -> (i32, i32) {
    %c0_i32 = arith.constant 0 : i32
    %c0_i32_0 = arith.constant 0 : i32
    %c0_i32_1 = arith.constant 0 : i32
    return %c0_i32, %c0_i32_0 : i32, i32
  }
  func.func @transform_2(%arg0: i32) -> (i32, i32) {
    %c0_i32 = arith.constant 0 : i32
    %c0_i32_0 = arith.constant 0 : i32
    %c0_i32_1 = arith.constant 0 : i32
    return %c0_i32, %c0_i32_0 : i32, i32
  }
  func.func @transform_3(%arg0: i32) -> (i32, i32, i32) {
    %c0_i32 = arith.constant 0 : i32
    %c0_i32_0 = arith.constant 0 : i32
    %c0_i32_1 = arith.constant 0 : i32
    return %arg0, %c0_i32, %c0_i32_0 : i32, i32, i32
  }
}

</mosaic_0001>

<llo_original>
// kernel: tpu_custom_call.1
$region0: #{tpu_custom_call.1}
  #allocation0 [shape = 'u32[]', space=smem, size = 0x4, offset = 0x4, fixed_abs, tag = 'smem constant byte address 0x4 - core index']
  #allocation1 [shape = 'u32[72,128]{1,0:T(1,128)}', space=vmem, size = 0x9000, scoped, tag = 'internal scratch']
  %s0 = inlined_call_operand.hbm [shape: f32[4,8,512], index: 0, kind: input, shape index: {}]
  %s1 = inlined_call_operand.hbm [shape: f32[512,384], index: 1, kind: input, shape index: {}]
  %s2 = inlined_call_operand.hbm [shape: f32[128,512], index: 2, kind: input, shape index: {}]
  %s3 = inlined_call_operand.hbm [shape: f32[4,8,512], index: 3, kind: output, shape index: {}]
  %s4 = sld [smem:[#allocation0]]
  $region57: #{tpu_custom_call.1} parent=0
    _
  %s6 = ssub.s32 1, %s4
  %s7 = scalar_select 0, %s6, %s4
  $region1: #{tpu_custom_call.1} parent=0
    #allocation2 [shape = 'u8[32768]{0}', space=vmem, size = 0x8000, scoped, tag = 'input window, operand 0']
    #allocation3 [shape = 's32[2]{0}', space=sflag, size = 0x8, scoped, tag = 'scoped memory for tpu_custom_call.1']
    #allocation4 [shape = 's32[2]{0}', space=sflag, size = 0x8, scoped, tag = 'scoped memory for tpu_custom_call.1']
    #allocation5 [shape = 'u8[786432]{0}', space=vmem, size = 0xc0000, scoped, tag = 'input window, operand 1, single buffered']
    #allocation6 [shape = 's32[1]{0}', space=sflag, size = 0x4, scoped, tag = 'scoped memory for tpu_custom_call.1']
    #allocation7 [shape = 'u8[262144]{0}', space=vmem, size = 0x40000, scoped, tag = 'input window, operand 2, single buffered']
    #allocation8 [shape = 'u8[32768]{0}', space=vmem, size = 0x8000, scoped, tag = 'output window, operand 0']
    %8 = vsyncpa [#allocation3], 0
    %s9 = scalar_lea.sflag [#allocation3], 1
    %10 = vsyncpa %s9, 0
    %11 = vsyncpa [#allocation6], 0
    %12 = vsyncpa [#allocation4], 0
    %s13 = scalar_lea.sflag [#allocation4], 1
    %14 = vsyncpa %s13, 0
    loop: start=0, step=1, limit=6
    $region2: #{tpu_custom_call.1} parent=1 // loop_pre_header
      _
    $region3: #{tpu_custom_call.1} parent=1 // loop_header
      %s16 = sphi 0, %s20
      %p17 = scmp.ge.s32.totalorder %s16, 6
      %s26 = sphi 0, %s28
      %s29 = sphi 0, %s26
      %s30 = sphi 0, %s29
      %s46 = sphi 0, %s30
      %s50 = sphi 0, %s50
      %s52 = sphi 0, %s50
      %s53 = sphi 0, %s52
      %s67 = sphi 0, %s53
      %s71 = sphi 0, %s71
      %s73 = sphi 0, %s71
      %s74 = sphi 0, %s73
      %s88 = sphi 0, %s74
      %s94 = sphi 0, %s96
      %s97 = sphi 0, %s94
      %s98 = sphi 0, %s97
      %s114 = sphi 0, %s98
    $region4: #{tpu_custom_call.1} parent=1 // loop_header_branch
      %19 = sbr.rel (%p17) target = $region8
    $region5: #{tpu_custom_call.1} parent=1 // loop_body
      %s21 = ssub.s32 %s16, 1
      %s22 = ssub.s32 %s16, 2
      %s23 = sadd.s32 %s16, 1
      %s24 = ssub.s32 %s16, %s23
      %p25 = scmp.eq.s32.totalorder %s24, 0
      %s27 = sadd.s32 %s26, 1
      %s28 = scalar_select %p25, %s26, %s27
      %p31 = pneg %p25
      %p32 = scmp.eq.s32.totalorder %s16, 3
      %p33 = por %p31, %p32
      %p34 = scmp.ne.s32.totalorder %s26, %s29
      %p35 = scmp.eq.s32.totalorder %s16, 0
      %p36 = por %p34, %p35
      %p37 = scmp.ne.s32.totalorder %s26, %s29
      %p38 = scmp.eq.s32.totalorder %s21, 3
      %p39 = por %p37, %p38
      %p40 = scmp.ne.s32.totalorder %s29, %s30
      %p41 = scmp.eq.s32.totalorder %s21, 0
      %p42 = por %p40, %p41
      %p43 = scmp.ne.s32.totalorder %s29, %s30
      %p44 = scmp.eq.s32.totalorder %s22, 3
      %p45 = por %p43, %p44
      %p47 = scmp.ne.s32.totalorder %s30, %s46
      %p48 = scmp.eq.s32.totalorder %s22, 0
      %p49 = por %p47, %p48
      %s51 = sadd.s32 %s50, 1
      %p54 = scmp.eq.s32.totalorder %s16, 3
      %p55 = scmp.ne.s32.totalorder %s50, %s52
      %p56 = scmp.eq.s32.totalorder %s16, 0
      %p57 = por %p55, %p56
      %p58 = scmp.ne.s32.totalorder %s50, %s52
      %p59 = scmp.eq.s32.totalorder %s21, 3
      %p60 = por %p58, %p59
      %p61 = scmp.ne.s32.totalorder %s52, %s53
      %p62 = scmp.eq.s32.totalorder %s21, 0
      %p63 = por %p61, %p62
      %p64 = scmp.ne.s32.totalorder %s52, %s53
      %p65 = scmp.eq.s32.totalorder %s22, 3
      %p66 = por %p64, %p65
      %p68 = scmp.ne.s32.totalorder %s53, %s67
      %p69 = scmp.eq.s32.totalorder %s22, 0
      %p70 = por %p68, %p69
      %s72 = sadd.s32 %s71, 1
      %p75 = scmp.eq.s32.totalorder %s16, 3
      %p76 = scmp.ne.s32.totalorder %s71, %s73
      %p77 = scmp.eq.s32.totalorder %s16, 0
      %p78 = por %p76, %p77
      %p79 = scmp.ne.s32.totalorder %s71, %s73
      %p80 = scmp.eq.s32.totalorder %s21, 3
      %p81 = por %p79, %p80
      %p82 = scmp.ne.s32.totalorder %s73, %s74
      %p83 = scmp.eq.s32.totalorder %s21, 0
      %p84 = por %p82, %p83
      %p85 = scmp.ne.s32.totalorder %s73, %s74
      %p86 = scmp.eq.s32.totalorder %s22, 3
      %p87 = por %p85, %p86
      %p89 = scmp.ne.s32.totalorder %s74, %s88
      %p90 = scmp.eq.s32.totalorder %s22, 0
      %p91 = por %p89, %p90
      %s92 = ssub.s32 %s16, %s23
      %p93 = scmp.eq.s32.totalorder %s92, 0
      %s95 = sadd.s32 %s94, 1
      %s96 = scalar_select %p93, %s94, %s95
      %p99 = pneg %p93
      %p100 = scmp.eq.s32.totalorder %s16, 3
      %p101 = por %p99, %p100
      %p102 = scmp.ne.s32.totalorder %s94, %s97
      %p103 = scmp.eq.s32.totalorder %s16, 0
      %p104 = por %p102, %p103
      %p105 = scmp.ne.s32.totalorder %s94, %s97
      %p106 = scmp.eq.s32.totalorder %s21, 3
      %p107 = por %p105, %p106
      %p108 = scmp.ne.s32.totalorder %s97, %s98
      %p109 = scmp.eq.s32.totalorder %s21, 0
      %p110 = por %p108, %p109
      %p111 = scmp.ne.s32.totalorder %s97, %s98
      %p112 = scmp.eq.s32.totalorder %s22, 3
      %p113 = por %p111, %p112
      %p115 = scmp.ne.s32.totalorder %s98, %s114
      %p116 = scmp.eq.s32.totalorder %s22, 0
      %p117 = por %p115, %p116
      %p118 = scmp.le.s32.totalorder 1, %s16
      %p119 = scmp.lt.s32.totalorder %s16, 5
      %p120 = pnand %p118, %p119
      %p121 = pneg %p120
      // Predicated region
      $region9: #{tpu_custom_call.1} parent=5 // pred_check
        _
      $region10: #{tpu_custom_call.1} parent=5 // pred_check_branch
        %123 = sbr.rel (%p120) target = $region12
      $region11: #{tpu_custom_call.1} parent=5 // pred_region
        %s124 = ssub.s32 %s16, 1
        // Predicated region
        $region13: #{tpu_custom_call.1} parent=11 // pred_check
          %p125 = pneg %p63
        $region14: #{tpu_custom_call.1} parent=11 // pred_check_branch
          %127 = sbr.rel (%p125) target = $region16
        $region15: #{tpu_custom_call.1} parent=11 // pred_region
          %129 = vsyncadd [#allocation6], 0
          %s130 = sshll.u32 %s1, 4
          %s131 = int_to_ptr.hbm [resolvable:$true] %s130
          %s132 = sshll.u32 [#allocation5], 4
          %s133 = int_to_ptr.vmem [resolvable:$true] %s132
          %138 = dma.hbm_to_vmem [thread:$0]  %s131, 24576, %s133, [#allocation6], 384, 384, 24
        $region16: #{tpu_custom_call.1} parent=11 // pred_fallthru
          _
        // Predicated region
        $region17: #{tpu_custom_call.1} parent=11 // pred_check
          %p139 = pneg %p84
        $region18: #{tpu_custom_call.1} parent=11 // pred_check_branch
          %141 = sbr.rel (%p139) target = $region20
        $region19: #{tpu_custom_call.1} parent=11 // pred_region
          %143 = vsyncadd [#allocation6], 0
          %s144 = sshll.u32 %s2, 4
          %s145 = int_to_ptr.hbm [resolvable:$true] %s144
          %s146 = sshll.u32 [#allocation7], 4
          %s147 = int_to_ptr.vmem [resolvable:$true] %s146
          %152 = dma.hbm_to_vmem [thread:$0]  %s145, 8192, %s147, [#allocation6], 512, 512, 32
        $region20: #{tpu_custom_call.1} parent=11 // pred_fallthru
          _
      $region12: #{tpu_custom_call.1} parent=5 // pred_fallthru
        _
      %p153 = scmp.lt.s32.totalorder %s16, 4
      // Predicated region
      $region21: #{tpu_custom_call.1} parent=5 // pred_check
        %p154 = pneg %p153
      $region22: #{tpu_custom_call.1} parent=5 // pred_check_branch
        %156 = sbr.rel (%p154) target = $region24
      $region23: #{tpu_custom_call.1} parent=5 // pred_region
        // Predicated region
        $region25: #{tpu_custom_call.1} parent=23 // pred_check
          %p157 = pneg %p36
        $region26: #{tpu_custom_call.1} parent=23 // pred_check_branch
          %159 = sbr.rel (%p157) target = $region28
        $region27: #{tpu_custom_call.1} parent=23 // pred_region
          %s160 = sand.u32 %s26, 1
          %s161 = scalar_lea.sflag [#allocation3], %s160
          %s162 = sand.u32 %s26, 1
          %s163 = smul.addr %s162, 32
          %s164 = scalar_lea.vmem [#allocation2], %s163
          %166 = vsyncadd %s161, 0
          %s167 = smul.addr %s16, 4
          %s168 = smul.addr %s167, 8
          %s169 = scalar_lea.hbm %s0, %s168
          %s171 = sshll.u32 %s169, 4
          %s172 = int_to_ptr.hbm [resolvable:$true] %s171
          %s173 = sshll.u32 %s164, 4
          %s174 = int_to_ptr.vmem [resolvable:$true] %s173
          %176 = dma.hbm_to_vmem [thread:$0]  %s172, 512, %s174, %s161
        $region28: #{tpu_custom_call.1} parent=23 // pred_fallthru
          _
      $region24: #{tpu_custom_call.1} parent=5 // pred_fallthru
        _
      %p177 = scmp.le.s32.totalorder 1, %s16
      %p178 = scmp.lt.s32.totalorder %s16, 5
      %p179 = pnand %p177, %p178
      %p180 = pneg %p179
      // Predicated region
      $region29: #{tpu_custom_call.1} parent=5 // pred_check
        _
      $region30: #{tpu_custom_call.1} parent=5 // pred_check_branch
        %182 = sbr.rel (%p179) target = $region32
      $region31: #{tpu_custom_call.1} parent=5 // pred_region
        %s183 = ssub.s32 %s16, 1
        %s184 = sand.u32 %s29, 1
        %s185 = scalar_lea.sflag [#allocation3], %s184
        %s186 = sand.u32 %s29, 1
        %s187 = smul.addr %s186, 32
        %s188 = scalar_lea.vmem [#allocation2], %s187
        // Predicated region
        $region33: #{tpu_custom_call.1} parent=31 // pred_check
          %p189 = pneg %p42
        $region34: #{tpu_custom_call.1} parent=31 // pred_check_branch
          %191 = sbr.rel (%p189) target = $region36
        $region35: #{tpu_custom_call.1} parent=31 // pred_region
          %193 = dma.done %s185, 512
        $region36: #{tpu_custom_call.1} parent=31 // pred_fallthru
          _
        // Predicated region
        $region37: #{tpu_custom_call.1} parent=31 // pred_check
          %p194 = pneg %p63
        $region38: #{tpu_custom_call.1} parent=31 // pred_check_branch
          %196 = sbr.rel (%p194) target = $region40
        $region39: #{tpu_custom_call.1} parent=31 // pred_region
          %198 = dma.done [#allocation6], 24576
        $region40: #{tpu_custom_call.1} parent=31 // pred_fallthru
          _
        // Predicated region
        $region41: #{tpu_custom_call.1} parent=31 // pred_check
          %p199 = pneg %p84
        $region42: #{tpu_custom_call.1} parent=31 // pred_check_branch
          %201 = sbr.rel (%p199) target = $region44
        $region43: #{tpu_custom_call.1} parent=31 // pred_region
          %203 = dma.done [#allocation6], 8192
        $region44: #{tpu_custom_call.1} parent=31 // pred_fallthru
          _
        %s204 = sand.u32 %s29, 1
        %s205 = scalar_lea.sflag [#allocation3], %s204
        %s206 = sand.u32 %s29, 1
        %s207 = smul.addr %s206, 32
        %s208 = scalar_lea.vmem [#allocation2], %s207
        %p209 = pneg %p42
        %p210 = pneg %p39
        %p211 = pneg %p63
        %p212 = pneg %p60
        %p213 = pneg %p84
        %p214 = pneg %p81
        %p215 = pneg %p110
        %p216 = pneg %p107
        %s217 = sand.u32 %s97, 1
        %s218 = scalar_lea.sflag [#allocation4], %s217
        %s219 = sand.u32 %s97, 1
        %s220 = smul.addr %s219, 32
        %s221 = scalar_lea.vmem [#allocation8], %s220
        %v222 = vld [vmem:[%s188] sm:$0xff]
        %v223 = vld [vmem:[%s188 + $0x8] sm:$0xff]
        %v224 = vld [vmem:[%s188 + $0x10] sm:$0xff]
        %v225 = vld [vmem:[%s188 + $0x18] sm:$0xff]
        %v226 = vld [vmem:[#allocation5] sm:$0xff]
        %v227 = vld [vmem:[#allocation5 + $0x8] sm:$0xff]
        %v228 = vld [vmem:[#allocation5 + $0x10] sm:$0xff]
        %v229 = vld [vmem:[#allocation5 + $0x18] sm:$0xff]
        %v230 = vld [vmem:[#allocation5 + $0x20] sm:$0xff]
        %v231 = vld [vmem:[#allocation5 + $0x28] sm:$0xff]
        %v232 = vld [vmem:[#allocation5 + $0x30] sm:$0xff]
        %v233 = vld [vmem:[#allocation5 + $0x38] sm:$0xff]
        %v234 = vld [vmem:[#allocation5 + $0x40] sm:$0xff]
        %v235 = vld [vmem:[#allocation5 + $0x48] sm:$0xff]
        %v236 = vld [vmem:[#allocation5 + $0x50] sm:$0xff]
        %v237 = vld [vmem:[#allocation5 + $0x58] sm:$0xff]
        %v238 = vld [vmem:[#allocation5 + $0x60] sm:$0xff]
        %v239 = vld [vmem:[#allocation5 + $0x68] sm:$0xff]
        %v240 = vld [vmem:[#allocation5 + $0x70] sm:$0xff]
        %v241 = vld [vmem:[#allocation5 + $0x78] sm:$0xff]
        %v242 = vld [vmem:[#allocation5 + $0x80] sm:$0xff]
        %v243 = vld [vmem:[#allocation5 + $0x88] sm:$0xff]
        %v244 = vld [vmem:[#allocation5 + $0x90] sm:$0xff]
        %v245 = vld [vmem:[#allocation5 + $0x98] sm:$0xff]
        %v246 = vld [vmem:[#allocation5 + $0xa0] sm:$0xff]
        %v247 = vld [vmem:[#allocation5 + $0xa8] sm:$0xff]
        %v248 = vld [vmem:[#allocation5 + $0xb0] sm:$0xff]
        %v249 = vld [vmem:[#allocation5 + $0xb8] sm:$0xff]
        %v250 = vld [vmem:[#allocation5 + $0xc0] sm:$0xff]
        %v251 = vld [vmem:[#allocation5 + $0xc8] sm:$0xff]
        %v252 = vld [vmem:[#allocation5 + $0xd0] sm:$0xff]
        %v253 = vld [vmem:[#allocation5 + $0xd8] sm:$0xff]
        %v254 = vld [vmem:[#allocation5 + $0xe0] sm:$0xff]
        %v255 = vld [vmem:[#allocation5 + $0xe8] sm:$0xff]
        %v256 = vld [vmem:[#allocation5 + $0xf0] sm:$0xff]
        %v257 = vld [vmem:[#allocation5 + $0xf8] sm:$0xff]
        %v258 = vld [vmem:[#allocation5 + $0x100] sm:$0xff]
        %v259 = vld [vmem:[#allocation5 + $0x108] sm:$0xff]
        %v260 = vld [vmem:[#allocation5 + $0x110] sm:$0xff]
        %v261 = vld [vmem:[#allocation5 + $0x118] sm:$0xff]
        %v262 = vld [vmem:[#allocation5 + $0x120] sm:$0xff]
        %v263 = vld [vmem:[#allocation5 + $0x128] sm:$0xff]
        %v264 = vld [vmem:[#allocation5 + $0x130] sm:$0xff]
        %v265 = vld [vmem:[#allocation5 + $0x138] sm:$0xff]
        %v266 = vld [vmem:[#allocation5 + $0x140] sm:$0xff]
        %v267 = vld [vmem:[#allocation5 + $0x148] sm:$0xff]
        %v268 = vld [vmem:[#allocation5 + $0x150] sm:$0xff]
        %v269 = vld [vmem:[#allocation5 + $0x158] sm:$0xff]
        %v270 = vld [vmem:[#allocation5 + $0x160] sm:$0xff]
        %v271 = vld [vmem:[#allocation5 + $0x168] sm:$0xff]
        %v272 = vld [vmem:[#allocation5 + $0x170] sm:$0xff]
        %v273 = vld [vmem:[#allocation5 + $0x178] sm:$0xff]
        %v274 = vld [vmem:[#allocation5 + $0x180] sm:$0xff]
        %v275 = vld [vmem:[#allocation5 + $0x188] sm:$0xff]
        %v276 = vld [vmem:[#allocation5 + $0x190] sm:$0xff]
        %v277 = vld [vmem:[#allocation5 + $0x198] sm:$0xff]
        %v278 = vld [vmem:[#allocation5 + $0x1a0] sm:$0xff]
        %v279 = vld [vmem:[#allocation5 + $0x1a8] sm:$0xff]
        %v280 = vld [vmem:[#allocation5 + $0x1b0] sm:$0xff]
        %v281 = vld [vmem:[#allocation5 + $0x1b8] sm:$0xff]
        %v282 = vld [vmem:[#allocation5 + $0x1c0] sm:$0xff]
        %v283 = vld [vmem:[#allocation5 + $0x1c8] sm:$0xff]
        %v284 = vld [vmem:[#allocation5 + $0x1d0] sm:$0xff]
        %v285 = vld [vmem:[#allocation5 + $0x1d8] sm:$0xff]
        %v286 = vld [vmem:[#allocation5 + $0x1e0] sm:$0xff]
        %v287 = vld [vmem:[#allocation5 + $0x1e8] sm:$0xff]
        %v288 = vld [vmem:[#allocation5 + $0x1f0] sm:$0xff]
        %v289 = vld [vmem:[#allocation5 + $0x1f8] sm:$0xff]
        %v290 = vld [vmem:[#allocation5 + $0x200] sm:$0xff]
        %v291 = vld [vmem:[#allocation5 + $0x208] sm:$0xff]
        %v292 = vld [vmem:[#allocation5 + $0x210] sm:$0xff]
        %v293 = vld [vmem:[#allocation5 + $0x218] sm:$0xff]
        %v294 = vld [vmem:[#allocation5 + $0x220] sm:$0xff]
        %v295 = vld [vmem:[#allocation5 + $0x228] sm:$0xff]
        %v296 = vld [vmem:[#allocation5 + $0x230] sm:$0xff]
        %v297 = vld [vmem:[#allocation5 + $0x238] sm:$0xff]
        %v298 = vld [vmem:[#allocation5 + $0x240] sm:$0xff]
        %v299 = vld [vmem:[#allocation5 + $0x248] sm:$0xff]
        %v300 = vld [vmem:[#allocation5 + $0x250] sm:$0xff]
        %v301 = vld [vmem:[#allocation5 + $0x258] sm:$0xff]
        %v302 = vld [vmem:[#allocation5 + $0x260] sm:$0xff]
        %v303 = vld [vmem:[#allocation5 + $0x268] sm:$0xff]
        %v304 = vld [vmem:[#allocation5 + $0x270] sm:$0xff]
        %v305 = vld [vmem:[#allocation5 + $0x278] sm:$0xff]
        %v306 = vld [vmem:[#allocation5 + $0x280] sm:$0xff]
        %v307 = vld [vmem:[#allocation5 + $0x288] sm:$0xff]
        %v308 = vld [vmem:[#allocation5 + $0x290] sm:$0xff]
        %v309 = vld [vmem:[#allocation5 + $0x298] sm:$0xff]
        %v310 = vld [vmem:[#allocation5 + $0x2a0] sm:$0xff]
        %v311 = vld [vmem:[#allocation5 + $0x2a8] sm:$0xff]
        %v312 = vld [vmem:[#allocation5 + $0x2b0] sm:$0xff]
        %v313 = vld [vmem:[#allocation5 + $0x2b8] sm:$0xff]
        %v314 = vld [vmem:[#allocation5 + $0x2c0] sm:$0xff]
        %v315 = vld [vmem:[#allocation5 + $0x2c8] sm:$0xff]
        %v316 = vld [vmem:[#allocation5 + $0x2d0] sm:$0xff]
        %v317 = vld [vmem:[#allocation5 + $0x2d8] sm:$0xff]
        %v318 = vld [vmem:[#allocation5 + $0x2e0] sm:$0xff]
        %v319 = vld [vmem:[#allocation5 + $0x2e8] sm:$0xff]
        %v320 = vld [vmem:[#allocation5 + $0x2f0] sm:$0xff]
        %v321 = vld [vmem:[#allocation5 + $0x2f8] sm:$0xff]
        %v322 = vld [vmem:[#allocation5 + $0x300] sm:$0xff]
        %v323 = vld [vmem:[#allocation5 + $0x308] sm:$0xff]
        %v324 = vld [vmem:[#allocation5 + $0x310] sm:$0xff]
        %v325 = vld [vmem:[#allocation5 + $0x318] sm:$0xff]
        %v326 = vld [vmem:[#allocation5 + $0x320] sm:$0xff]
        %v327 = vld [vmem:[#allocation5 + $0x328] sm:$0xff]
        %v328 = vld [vmem:[#allocation5 + $0x330] sm:$0xff]
        %v329 = vld [vmem:[#allocation5 + $0x338] sm:$0xff]
        %v330 = vld [vmem:[#allocation5 + $0x340] sm:$0xff]
        %v331 = vld [vmem:[#allocation5 + $0x348] sm:$0xff]
        %v332 = vld [vmem:[#allocation5 + $0x350] sm:$0xff]
        %v333 = vld [vmem:[#allocation5 + $0x358] sm:$0xff]
        %v334 = vld [vmem:[#allocation5 + $0x360] sm:$0xff]
        %v335 = vld [vmem:[#allocation5 + $0x368] sm:$0xff]
        %v336 = vld [vmem:[#allocation5 + $0x370] sm:$0xff]
        %v337 = vld [vmem:[#allocation5 + $0x378] sm:$0xff]
        %v338 = vld [vmem:[#allocation5 + $0x380] sm:$0xff]
        %v339 = vld [vmem:[#allocation5 + $0x388] sm:$0xff]
        %v340 = vld [vmem:[#allocation5 + $0x390] sm:$0xff]
        %v341 = vld [vmem:[#allocation5 + $0x398] sm:$0xff]
        %v342 = vld [vmem:[#allocation5 + $0x3a0] sm:$0xff]
        %v343 = vld [vmem:[#allocation5 + $0x3a8] sm:$0xff]
        %v344 = vld [vmem:[#allocation5 + $0x3b0] sm:$0xff]
        %v345 = vld [vmem:[#allocation5 + $0x3b8] sm:$0xff]
        %v346 = vld [vmem:[#allocation5 + $0x3c0] sm:$0xff]
        %v347 = vld [vmem:[#allocation5 + $0x3c8] sm:$0xff]
        %v348 = vld [vmem:[#allocation5 + $0x3d0] sm:$0xff]
        %v349 = vld [vmem:[#allocation5 + $0x3d8] sm:$0xff]
        %v350 = vld [vmem:[#allocation5 + $0x3e0] sm:$0xff]
        %v351 = vld [vmem:[#allocation5 + $0x3e8] sm:$0xff]
        %v352 = vld [vmem:[#allocation5 + $0x3f0] sm:$0xff]
        %v353 = vld [vmem:[#allocation5 + $0x3f8] sm:$0xff]
        %v354 = vld [vmem:[#allocation5 + $0x400] sm:$0xff]
        %v355 = vld [vmem:[#allocation5 + $0x408] sm:$0xff]
        %v356 = vld [vmem:[#allocation5 + $0x410] sm:$0xff]
        %v357 = vld [vmem:[#allocation5 + $0x418] sm:$0xff]
        %v358 = vld [vmem:[#allocation5 + $0x420] sm:$0xff]
        %v359 = vld [vmem:[#allocation5 + $0x428] sm:$0xff]
        %v360 = vld [vmem:[#allocation5 + $0x430] sm:$0xff]
        %v361 = vld [vmem:[#allocation5 + $0x438] sm:$0xff]
        %v362 = vld [vmem:[#allocation5 + $0x440] sm:$0xff]
        %v363 = vld [vmem:[#allocation5 + $0x448] sm:$0xff]
        %v364 = vld [vmem:[#allocation5 + $0x450] sm:$0xff]
        %v365 = vld [vmem:[#allocation5 + $0x458] sm:$0xff]
        %v366 = vld [vmem:[#allocation5 + $0x460] sm:$0xff]
        %v367 = vld [vmem:[#allocation5 + $0x468] sm:$0xff]
        %v368 = vld [vmem:[#allocation5 + $0x470] sm:$0xff]
        %v369 = vld [vmem:[#allocation5 + $0x478] sm:$0xff]
        %v370 = vld [vmem:[#allocation5 + $0x480] sm:$0xff]
        %v371 = vld [vmem:[#allocation5 + $0x488] sm:$0xff]
        %v372 = vld [vmem:[#allocation5 + $0x490] sm:$0xff]
        %v373 = vld [vmem:[#allocation5 + $0x498] sm:$0xff]
        %v374 = vld [vmem:[#allocation5 + $0x4a0] sm:$0xff]
        %v375 = vld [vmem:[#allocation5 + $0x4a8] sm:$0xff]
        %v376 = vld [vmem:[#allocation5 + $0x4b0] sm:$0xff]
        %v377 = vld [vmem:[#allocation5 + $0x4b8] sm:$0xff]
        %v378 = vld [vmem:[#allocation5 + $0x4c0] sm:$0xff]
        %v379 = vld [vmem:[#allocation5 + $0x4c8] sm:$0xff]
        %v380 = vld [vmem:[#allocation5 + $0x4d0] sm:$0xff]
        %v381 = vld [vmem:[#allocation5 + $0x4d8] sm:$0xff]
        %v382 = vld [vmem:[#allocation5 + $0x4e0] sm:$0xff]
        %v383 = vld [vmem:[#allocation5 + $0x4e8] sm:$0xff]
        %v384 = vld [vmem:[#allocation5 + $0x4f0] sm:$0xff]
        %v385 = vld [vmem:[#allocation5 + $0x4f8] sm:$0xff]
        %v386 = vld [vmem:[#allocation5 + $0x500] sm:$0xff]
        %v387 = vld [vmem:[#allocation5 + $0x508] sm:$0xff]
        %v388 = vld [vmem:[#allocation5 + $0x510] sm:$0xff]
        %v389 = vld [vmem:[#allocation5 + $0x518] sm:$0xff]
        %v390 = vld [vmem:[#allocation5 + $0x520] sm:$0xff]
        %v391 = vld [vmem:[#allocation5 + $0x528] sm:$0xff]
        %v392 = vld [vmem:[#allocation5 + $0x530] sm:$0xff]
        %v393 = vld [vmem:[#allocation5 + $0x538] sm:$0xff]
        %v394 = vld [vmem:[#allocation5 + $0x540] sm:$0xff]
        %v395 = vld [vmem:[#allocation5 + $0x548] sm:$0xff]
        %v396 = vld [vmem:[#allocation5 + $0x550] sm:$0xff]
        %v397 = vld [vmem:[#allocation5 + $0x558] sm:$0xff]
        %v398 = vld [vmem:[#allocation5 + $0x560] sm:$0xff]
        %v399 = vld [vmem:[#allocation5 + $0x568] sm:$0xff]
        %v400 = vld [vmem:[#allocation5 + $0x570] sm:$0xff]
        %v401 = vld [vmem:[#allocation5 + $0x578] sm:$0xff]
        %v402 = vld [vmem:[#allocation5 + $0x580] sm:$0xff]
        %v403 = vld [vmem:[#allocation5 + $0x588] sm:$0xff]
        %v404 = vld [vmem:[#allocation5 + $0x590] sm:$0xff]
        %v405 = vld [vmem:[#allocation5 + $0x598] sm:$0xff]
        %v406 = vld [vmem:[#allocation5 + $0x5a0] sm:$0xff]
        %v407 = vld [vmem:[#allocation5 + $0x5a8] sm:$0xff]
        %v408 = vld [vmem:[#allocation5 + $0x5b0] sm:$0xff]
        %v409 = vld [vmem:[#allocation5 + $0x5b8] sm:$0xff]
        %v410 = vld [vmem:[#allocation5 + $0x5c0] sm:$0xff]
        %v411 = vld [vmem:[#allocation5 + $0x5c8] sm:$0xff]
        %v412 = vld [vmem:[#allocation5 + $0x5d0] sm:$0xff]
        %v413 = vld [vmem:[#allocation5 + $0x5d8] sm:$0xff]
        %v414 = vld [vmem:[#allocation5 + $0x5e0] sm:$0xff]
        %v415 = vld [vmem:[#allocation5 + $0x5e8] sm:$0xff]
        %v416 = vld [vmem:[#allocation5 + $0x5f0] sm:$0xff]
        %v417 = vld [vmem:[#allocation5 + $0x5f8] sm:$0xff]
        %418 = vmatpush.msra.mxu0 %v271
        %419 = vmatpush.msra.mxu0 %v268
        %420 = vmatpush.msra.mxu0 %v265
        %421 = vmatpush.msra.mxu0 %v262
        %422 = vmatpush.msra.mxu0 %v259
        %423 = vmatpush.msra.mxu0 %v256
        %424 = vmatpush.msra.mxu0 %v253
        %425 = vmatpush.msra.mxu0 %v250
        %426 = vmatpush.msra.mxu0 %v247
        %427 = vmatpush.msra.mxu0 %v244
        %428 = vmatpush.msra.mxu0 %v241
        %429 = vmatpush.msra.mxu0 %v238
        %430 = vmatpush.msra.mxu0 %v235
        %431 = vmatpush.msra.mxu0 %v232
        %432 = vmatpush.msra.mxu0 %v229
        %433 = vmatpush.msra.mxu0 %v226
        %434 = vmatmul.f32.gmra.mxu0 %v222
        %v435 = vpop.f32.mrf.mxu0
        %v436 = vadd.f32 0.0, %v435
        %437 = vdwg.mxu0
        %438 = vmatpush.msra.mxu0 %v319
        %439 = vmatpush.msra.mxu0 %v316
        %440 = vmatpush.msra.mxu0 %v313
        %441 = vmatpush.msra.mxu0 %v310
        %442 = vmatpush.msra.mxu0 %v307
        %443 = vmatpush.msra.mxu0 %v304
        %444 = vmatpush.msra.mxu0 %v301
        %445 = vmatpush.msra.mxu0 %v298
        %446 = vmatpush.msra.mxu0 %v295
        %447 = vmatpush.msra.mxu0 %v292
        %448 = vmatpush.msra.mxu0 %v289
        %449 = vmatpush.msra.mxu0 %v286
        %450 = vmatpush.msra.mxu0 %v283
        %451 = vmatpush.msra.mxu0 %v280
        %452 = vmatpush.msra.mxu0 %v277
        %453 = vmatpush.msra.mxu0 %v274
        %454 = vmatmul.f32.gmra.mxu0 %v223
        %v455 = vpop.f32.mrf.mxu0
        %v456 = vadd.f32 %v436, %v455
        %457 = vdwg.mxu0
        %458 = vmatpush.msra.mxu0 %v367
        %459 = vmatpush.msra.mxu0 %v364
        %460 = vmatpush.msra.mxu0 %v361
        %461 = vmatpush.msra.mxu0 %v358
        %462 = vmatpush.msra.mxu0 %v355
        %463 = vmatpush.msra.mxu0 %v352
        %464 = vmatpush.msra.mxu0 %v349
        %465 = vmatpush.msra.mxu0 %v346
        %466 = vmatpush.msra.mxu0 %v343
        %467 = vmatpush.msra.mxu0 %v340
        %468 = vmatpush.msra.mxu0 %v337
        %469 = vmatpush.msra.mxu0 %v334
        %470 = vmatpush.msra.mxu0 %v331
        %471 = vmatpush.msra.mxu0 %v328
        %472 = vmatpush.msra.mxu0 %v325
        %473 = vmatpush.msra.mxu0 %v322
        %474 = vmatmul.f32.gmra.mxu0 %v224
        %v475 = vpop.f32.mrf.mxu0
        %v476 = vadd.f32 %v456, %v475
        %477 = vdwg.mxu0
        %478 = vmatpush.msra.mxu0 %v415
        %479 = vmatpush.msra.mxu0 %v412
        %480 = vmatpush.msra.mxu0 %v409
        %481 = vmatpush.msra.mxu0 %v406
        %482 = vmatpush.msra.mxu0 %v403
        %483 = vmatpush.msra.mxu0 %v400
        %484 = vmatpush.msra.mxu0 %v397
        %485 = vmatpush.msra.mxu0 %v394
        %486 = vmatpush.msra.mxu0 %v391
        %487 = vmatpush.msra.mxu0 %v388
        %488 = vmatpush.msra.mxu0 %v385
        %489 = vmatpush.msra.mxu0 %v382
        %490 = vmatpush.msra.mxu0 %v379
        %491 = vmatpush.msra.mxu0 %v376
        %492 = vmatpush.msra.mxu0 %v373
        %493 = vmatpush.msra.mxu0 %v370
        %494 = vmatmul.f32.gmra.mxu0 %v225
        %v495 = vpop.f32.mrf.mxu0
        %v496 = vadd.f32 %v476, %v495
        %497 = vdwg.mxu0
        %498 = vmatpush.msra.mxu0 %v272
        %499 = vmatpush.msra.mxu0 %v269
        %500 = vmatpush.msra.mxu0 %v266
        %501 = vmatpush.msra.mxu0 %v263
        %502 = vmatpush.msra.mxu0 %v260
        %503 = vmatpush.msra.mxu0 %v257
        %504 = vmatpush.msra.mxu0 %v254
        %505 = vmatpush.msra.mxu0 %v251
        %506 = vmatpush.msra.mxu0 %v248
        %507 = vmatpush.msra.mxu0 %v245
        %508 = vmatpush.msra.mxu0 %v242
        %509 = vmatpush.msra.mxu0 %v239
        %510 = vmatpush.msra.mxu0 %v236
        %511 = vmatpush.msra.mxu0 %v233
        %512 = vmatpush.msra.mxu0 %v230
        %513 = vmatpush.msra.mxu0 %v227
        %514 = vmatmul.f32.gmra.mxu0 %v222
        %v515 = vpop.f32.mrf.mxu0
        %v516 = vadd.f32 0.0, %v515
        %517 = vdwg.mxu0
        %518 = vmatpush.msra.mxu0 %v320
        %519 = vmatpush.msra.mxu0 %v317
        %520 = vmatpush.msra.mxu0 %v314
        %521 = vmatpush.msra.mxu0 %v311
        %522 = vmatpush.msra.mxu0 %v308
        %523 = vmatpush.msra.mxu0 %v305
        %524 = vmatpush.msra.mxu0 %v302
        %525 = vmatpush.msra.mxu0 %v299
        %526 = vmatpush.msra.mxu0 %v296
        %527 = vmatpush.msra.mxu0 %v293
        %528 = vmatpush.msra.mxu0 %v290
        %529 = vmatpush.msra.mxu0 %v287
        %530 = vmatpush.msra.mxu0 %v284
        %531 = vmatpush.msra.mxu0 %v281
        %532 = vmatpush.msra.mxu0 %v278
        %533 = vmatpush.msra.mxu0 %v275
        %534 = vmatmul.f32.gmra.mxu0 %v223
        %v535 = vpop.f32.mrf.mxu0
        %v536 = vadd.f32 %v516, %v535
        %537 = vdwg.mxu0
        %538 = vmatpush.msra.mxu0 %v368
        %539 = vmatpush.msra.mxu0 %v365
        %540 = vmatpush.msra.mxu0 %v362
        %541 = vmatpush.msra.mxu0 %v359
        %542 = vmatpush.msra.mxu0 %v356
        %543 = vmatpush.msra.mxu0 %v353
        %544 = vmatpush.msra.mxu0 %v350
        %545 = vmatpush.msra.mxu0 %v347
        %546 = vmatpush.msra.mxu0 %v344
        %547 = vmatpush.msra.mxu0 %v341
        %548 = vmatpush.msra.mxu0 %v338
        %549 = vmatpush.msra.mxu0 %v335
        %550 = vmatpush.msra.mxu0 %v332
        %551 = vmatpush.msra.mxu0 %v329
        %552 = vmatpush.msra.mxu0 %v326
        %553 = vmatpush.msra.mxu0 %v323
        %554 = vmatmul.f32.gmra.mxu0 %v224
        %v555 = vpop.f32.mrf.mxu0
        %v556 = vadd.f32 %v536, %v555
        %557 = vdwg.mxu0
        %558 = vmatpush.msra.mxu0 %v416
        %559 = vmatpush.msra.mxu0 %v413
        %560 = vmatpush.msra.mxu0 %v410
        %561 = vmatpush.msra.mxu0 %v407
        %562 = vmatpush.msra.mxu0 %v404
        %563 = vmatpush.msra.mxu0 %v401
        %564 = vmatpush.msra.mxu0 %v398
        %565 = vmatpush.msra.mxu0 %v395
        %566 = vmatpush.msra.mxu0 %v392
        %567 = vmatpush.msra.mxu0 %v389
        %568 = vmatpush.msra.mxu0 %v386
        %569 = vmatpush.msra.mxu0 %v383
        %570 = vmatpush.msra.mxu0 %v380
        %571 = vmatpush.msra.mxu0 %v377
        %572 = vmatpush.msra.mxu0 %v374
        %573 = vmatpush.msra.mxu0 %v371
        %574 = vmatmul.f32.gmra.mxu0 %v225
        %v575 = vpop.f32.mrf.mxu0
        %v576 = vadd.f32 %v556, %v575
        %577 = vdwg.mxu0
        %578 = vmatpush.msra.mxu0 %v273
        %579 = vmatpush.msra.mxu0 %v270
        %580 = vmatpush.msra.mxu0 %v267
        %581 = vmatpush.msra.mxu0 %v264
        %582 = vmatpush.msra.mxu0 %v261
        %583 = vmatpush.msra.mxu0 %v258
        %584 = vmatpush.msra.mxu0 %v255
        %585 = vmatpush.msra.mxu0 %v252
        %586 = vmatpush.msra.mxu0 %v249
        %587 = vmatpush.msra.mxu0 %v246
        %588 = vmatpush.msra.mxu0 %v243
        %589 = vmatpush.msra.mxu0 %v240
        %590 = vmatpush.msra.mxu0 %v237
        %591 = vmatpush.msra.mxu0 %v234
        %592 = vmatpush.msra.mxu0 %v231
        %593 = vmatpush.msra.mxu0 %v228
        %594 = vmatmul.f32.gmra.mxu0 %v222
        %v595 = vpop.f32.mrf.mxu0
        %v596 = vadd.f32 0.0, %v595
        %597 = vdwg.mxu0
        %598 = vmatpush.msra.mxu0 %v321
        %599 = vmatpush.msra.mxu0 %v318
        %600 = vmatpush.msra.mxu0 %v315
        %601 = vmatpush.msra.mxu0 %v312
        %602 = vmatpush.msra.mxu0 %v309
        %603 = vmatpush.msra.mxu0 %v306
        %604 = vmatpush.msra.mxu0 %v303
        %605 = vmatpush.msra.mxu0 %v300
        %606 = vmatpush.msra.mxu0 %v297
        %607 = vmatpush.msra.mxu0 %v294
        %608 = vmatpush.msra.mxu0 %v291
        %609 = vmatpush.msra.mxu0 %v288
        %610 = vmatpush.msra.mxu0 %v285
        %611 = vmatpush.msra.mxu0 %v282
        %612 = vmatpush.msra.mxu0 %v279
        %613 = vmatpush.msra.mxu0 %v276
        %614 = vmatmul.f32.gmra.mxu0 %v223
        %v615 = vpop.f32.mrf.mxu0
        %v616 = vadd.f32 %v596, %v615
        %617 = vdwg.mxu0
        %618 = vmatpush.msra.mxu0 %v369
        %619 = vmatpush.msra.mxu0 %v366
        %620 = vmatpush.msra.mxu0 %v363
        %621 = vmatpush.msra.mxu0 %v360
        %622 = vmatpush.msra.mxu0 %v357
        %623 = vmatpush.msra.mxu0 %v354
        %624 = vmatpush.msra.mxu0 %v351
        %625 = vmatpush.msra.mxu0 %v348
        %626 = vmatpush.msra.mxu0 %v345
        %627 = vmatpush.msra.mxu0 %v342
        %628 = vmatpush.msra.mxu0 %v339
        %629 = vmatpush.msra.mxu0 %v336
        %630 = vmatpush.msra.mxu0 %v333
        %631 = vmatpush.msra.mxu0 %v330
        %632 = vmatpush.msra.mxu0 %v327
        %633 = vmatpush.msra.mxu0 %v324
        %634 = vmatmul.f32.gmra.mxu0 %v224
        %v635 = vpop.f32.mrf.mxu0
        %v636 = vadd.f32 %v616, %v635
        %637 = vdwg.mxu0
        %638 = vmatpush.msra.mxu0 %v417
        %639 = vmatpush.msra.mxu0 %v414
        %640 = vmatpush.msra.mxu0 %v411
        %641 = vmatpush.msra.mxu0 %v408
        %642 = vmatpush.msra.mxu0 %v405
        %643 = vmatpush.msra.mxu0 %v402
        %644 = vmatpush.msra.mxu0 %v399
        %645 = vmatpush.msra.mxu0 %v396
        %646 = vmatpush.msra.mxu0 %v393
        %647 = vmatpush.msra.mxu0 %v390
        %648 = vmatpush.msra.mxu0 %v387
        %649 = vmatpush.msra.mxu0 %v384
        %650 = vmatpush.msra.mxu0 %v381
        %651 = vmatpush.msra.mxu0 %v378
        %652 = vmatpush.msra.mxu0 %v375
        %653 = vmatpush.msra.mxu0 %v372
        %654 = vmatmul.f32.gmra.mxu0 %v225
        %v655 = vpop.f32.mrf.mxu0
        %v656 = vadd.f32 %v636, %v655
        %657 = vdwg.mxu0
        %658 = vmatpush.xpose.msra.mxu0 0.0
        %659 = vmatpush.xpose.msra.mxu0 0.0
        %660 = vmatpush.xpose.msra.mxu0 0.0
        %661 = vmatpush.xpose.msra.mxu0 0.0
        %662 = vmatpush.xpose.msra.mxu0 0.0
        %663 = vmatpush.xpose.msra.mxu0 0.0
        %664 = vmatpush.xpose.msra.mxu0 0.0
        %665 = vmatpush.xpose.msra.mxu0 0.0
        %666 = vmatpush.xpose.msra.mxu0 0.0
        %667 = vmatpush.xpose.msra.mxu0 0.0
        %668 = vmatpush.xpose.msra.mxu0 0.0
        %669 = vmatpush.xpose.msra.mxu0 0.0
        %670 = vmatpush.xpose.msra.mxu0 0.0
        %671 = vmatpush.xpose.msra.mxu0 0.0
        %672 = vmatpush.xpose.msra.mxu0 0.0
        %673 = vmatpush.xpose.msra.mxu0 %v576
        %674 = vmatmul.f32.gmra.mxu0 %v496
        %v675 = vpop.f32.mrf.mxu0
        %v676 = vadd.f32 0.0, %v675
        %677 = vdwg.mxu0
        %vm678 = vcmask 64512
        %v679 = vsel %vm678, %v676, -inf
        %680 = vmax.xlane.f32.xlu0 %v679
        %v681 = vpop.xlane.xlu0 %680
        %v682 = vsub.f32 %v676, %v681
        %v683 = vmul.f32 %v682, 1.442695
        %v684 = vpow.pop %v683
        %v685 = vsel %vm678, %v684, 0.0
        %686 = vadd.xlane.f32.xlu0 %v685
        %v687 = vpop.xlane.xlu0 %686
        %v688 = vrcp.pop %v687
        %v689 = vmul.f32 %v687, %v688
        %v690 = vsub.f32 1.0, %v689
        %v691 = vmul.f32 %v688, %v690
        %v692 = vadd.f32 %v688, %v691
        %vm693 = vweird.f32 %v687
        %vm694 = vweird.f32 %v688
        %vm695 = vmor %vm693, %vm694
        %v696 = vsel %vm695, %v688, %v692
        %v697 = vand.u32 2147483647, %v687
        %vm698 = vcmp.eq.f32.partialorder %v697, 8.507059e+37
        %v699 = vand.u32 %v687, 2147483648
        %v700 = vor.u32 1.1754944e-38, %v699
        %v701 = vsel %vm698, %v700, %v696
        %v702 = vmul.f32 1.0, %v701
        %v703 = vmul.f32 %v684, %v702
        %v705 = vsel %vm678, %v703, 0
        %707 = vmatpush.msra.mxu0 0.0
        %708 = vmatpush.msra.mxu0 0.0
        %709 = vmatpush.msra.mxu0 0.0
        %710 = vmatpush.msra.mxu0 0.0
        %711 = vmatpush.msra.mxu0 0.0
        %712 = vmatpush.msra.mxu0 0.0
        %713 = vmatpush.msra.mxu0 0.0
        %714 = vmatpush.msra.mxu0 0.0
        %715 = vmatpush.msra.mxu0 0.0
        %716 = vmatpush.msra.mxu0 0.0
        %717 = vmatpush.msra.mxu0 0.0
        %718 = vmatpush.msra.mxu0 0.0
        %719 = vmatpush.msra.mxu0 0.0
        %720 = vmatpush.msra.mxu0 0.0
        %721 = vmatpush.msra.mxu0 0.0
        %722 = vmatpush.msra.mxu0 %v656
        %723 = vmatmul.f32.gmra.mxu0 %v705
        %v724 = vpop.f32.mrf.mxu0
        %v725 = vadd.f32 0.0, %v724
        %726 = vdwg.mxu0
        %v727 = vld [vmem:[#allocation7] sm:$0xff]
        %v728 = vld [vmem:[#allocation7 + $0x8] sm:$0xff]
        %v729 = vld [vmem:[#allocation7 + $0x10] sm:$0xff]
        %v730 = vld [vmem:[#allocation7 + $0x18] sm:$0xff]
        %v731 = vld [vmem:[#allocation7 + $0x20] sm:$0xff]
        %v732 = vld [vmem:[#allocation7 + $0x28] sm:$0xff]
        %v733 = vld [vmem:[#allocation7 + $0x30] sm:$0xff]
        %v734 = vld [vmem:[#allocation7 + $0x38] sm:$0xff]
        %v735 = vld [vmem:[#allocation7 + $0x40] sm:$0xff]
        %v736 = vld [vmem:[#allocation7 + $0x48] sm:$0xff]
        %v737 = vld [vmem:[#allocation7 + $0x50] sm:$0xff]
        %v738 = vld [vmem:[#allocation7 + $0x58] sm:$0xff]
        %v739 = vld [vmem:[#allocation7 + $0x60] sm:$0xff]
        %v740 = vld [vmem:[#allocation7 + $0x68] sm:$0xff]
        %v741 = vld [vmem:[#allocation7 + $0x70] sm:$0xff]
        %v742 = vld [vmem:[#allocation7 + $0x78] sm:$0xff]
        %v743 = vld [vmem:[#allocation7 + $0x80] sm:$0xff]
        %v744 = vld [vmem:[#allocation7 + $0x88] sm:$0xff]
        %v745 = vld [vmem:[#allocation7 + $0x90] sm:$0xff]
        %v746 = vld [vmem:[#allocation7 + $0x98] sm:$0xff]
        %v747 = vld [vmem:[#allocation7 + $0xa0] sm:$0xff]
        %v748 = vld [vmem:[#allocation7 + $0xa8] sm:$0xff]
        %v749 = vld [vmem:[#allocation7 + $0xb0] sm:$0xff]
        %v750 = vld [vmem:[#allocation7 + $0xb8] sm:$0xff]
        %v751 = vld [vmem:[#allocation7 + $0xc0] sm:$0xff]
        %v752 = vld [vmem:[#allocation7 + $0xc8] sm:$0xff]
        %v753 = vld [vmem:[#allocation7 + $0xd0] sm:$0xff]
        %v754 = vld [vmem:[#allocation7 + $0xd8] sm:$0xff]
        %v755 = vld [vmem:[#allocation7 + $0xe0] sm:$0xff]
        %v756 = vld [vmem:[#allocation7 + $0xe8] sm:$0xff]
        %v757 = vld [vmem:[#allocation7 + $0xf0] sm:$0xff]
        %v758 = vld [vmem:[#allocation7 + $0xf8] sm:$0xff]
        %v759 = vld [vmem:[#allocation7 + $0x100] sm:$0xff]
        %v760 = vld [vmem:[#allocation7 + $0x108] sm:$0xff]
        %v761 = vld [vmem:[#allocation7 + $0x110] sm:$0xff]
        %v762 = vld [vmem:[#allocation7 + $0x118] sm:$0xff]
        %v763 = vld [vmem:[#allocation7 + $0x120] sm:$0xff]
        %v764 = vld [vmem:[#allocation7 + $0x128] sm:$0xff]
        %v765 = vld [vmem:[#allocation7 + $0x130] sm:$0xff]
        %v766 = vld [vmem:[#allocation7 + $0x138] sm:$0xff]
        %v767 = vld [vmem:[#allocation7 + $0x140] sm:$0xff]
        %v768 = vld [vmem:[#allocation7 + $0x148] sm:$0xff]
        %v769 = vld [vmem:[#allocation7 + $0x150] sm:$0xff]
        %v770 = vld [vmem:[#allocation7 + $0x158] sm:$0xff]
        %v771 = vld [vmem:[#allocation7 + $0x160] sm:$0xff]
        %v772 = vld [vmem:[#allocation7 + $0x168] sm:$0xff]
        %v773 = vld [vmem:[#allocation7 + $0x170] sm:$0xff]
        %v774 = vld [vmem:[#allocation7 + $0x178] sm:$0xff]
        %v775 = vld [vmem:[#allocation7 + $0x180] sm:$0xff]
        %v776 = vld [vmem:[#allocation7 + $0x188] sm:$0xff]
        %v777 = vld [vmem:[#allocation7 + $0x190] sm:$0xff]
        %v778 = vld [vmem:[#allocation7 + $0x198] sm:$0xff]
        %v779 = vld [vmem:[#allocation7 + $0x1a0] sm:$0xff]
        %v780 = vld [vmem:[#allocation7 + $0x1a8] sm:$0xff]
        %v781 = vld [vmem:[#allocation7 + $0x1b0] sm:$0xff]
        %v782 = vld [vmem:[#allocation7 + $0x1b8] sm:$0xff]
        %v783 = vld [vmem:[#allocation7 + $0x1c0] sm:$0xff]
        %v784 = vld [vmem:[#allocation7 + $0x1c8] sm:$0xff]
        %v785 = vld [vmem:[#allocation7 + $0x1d0] sm:$0xff]
        %v786 = vld [vmem:[#allocation7 + $0x1d8] sm:$0xff]
        %v787 = vld [vmem:[#allocation7 + $0x1e0] sm:$0xff]
        %v788 = vld [vmem:[#allocation7 + $0x1e8] sm:$0xff]
        %v789 = vld [vmem:[#allocation7 + $0x1f0] sm:$0xff]
        %v790 = vld [vmem:[#allocation7 + $0x1f8] sm:$0xff]
        %791 = vmatpush.msra.mxu0 %v787
        %792 = vmatpush.msra.mxu0 %v783
        %793 = vmatpush.msra.mxu0 %v779
        %794 = vmatpush.msra.mxu0 %v775
        %795 = vmatpush.msra.mxu0 %v771
        %796 = vmatpush.msra.mxu0 %v767
        %797 = vmatpush.msra.mxu0 %v763
        %798 = vmatpush.msra.mxu0 %v759
        %799 = vmatpush.msra.mxu0 %v755
        %800 = vmatpush.msra.mxu0 %v751
        %801 = vmatpush.msra.mxu0 %v747
        %802 = vmatpush.msra.mxu0 %v743
        %803 = vmatpush.msra.mxu0 %v739
        %804 = vmatpush.msra.mxu0 %v735
        %805 = vmatpush.msra.mxu0 %v731
        %806 = vmatpush.msra.mxu0 %v727
        %807 = vmatmul.f32.gmra.mxu0 %v725
        %v808 = vpop.f32.mrf.mxu0
        %v809 = vadd.f32 0.0, %v808
        %810 = vdwg.mxu0
        %811 = vmatpush.msra.mxu0 %v788
        %812 = vmatpush.msra.mxu0 %v784
        %813 = vmatpush.msra.mxu0 %v780
        %814 = vmatpush.msra.mxu0 %v776
        %815 = vmatpush.msra.mxu0 %v772
        %816 = vmatpush.msra.mxu0 %v768
        %817 = vmatpush.msra.mxu0 %v764
        %818 = vmatpush.msra.mxu0 %v760
        %819 = vmatpush.msra.mxu0 %v756
        %820 = vmatpush.msra.mxu0 %v752
        %821 = vmatpush.msra.mxu0 %v748
        %822 = vmatpush.msra.mxu0 %v744
        %823 = vmatpush.msra.mxu0 %v740
        %824 = vmatpush.msra.mxu0 %v736
        %825 = vmatpush.msra.mxu0 %v732
        %826 = vmatpush.msra.mxu0 %v728
        %827 = vmatmul.f32.gmra.mxu0 %v725
        %v828 = vpop.f32.mrf.mxu0
        %v829 = vadd.f32 0.0, %v828
        %830 = vdwg.mxu0
        %831 = vmatpush.msra.mxu0 %v789
        %832 = vmatpush.msra.mxu0 %v785
        %833 = vmatpush.msra.mxu0 %v781
        %834 = vmatpush.msra.mxu0 %v777
        %835 = vmatpush.msra.mxu0 %v773
        %836 = vmatpush.msra.mxu0 %v769
        %837 = vmatpush.msra.mxu0 %v765
        %838 = vmatpush.msra.mxu0 %v761
        %839 = vmatpush.msra.mxu0 %v757
        %840 = vmatpush.msra.mxu0 %v753
        %841 = vmatpush.msra.mxu0 %v749
        %842 = vmatpush.msra.mxu0 %v745
        %843 = vmatpush.msra.mxu0 %v741
        %844 = vmatpush.msra.mxu0 %v737
        %845 = vmatpush.msra.mxu0 %v733
        %846 = vmatpush.msra.mxu0 %v729
        %847 = vmatmul.f32.gmra.mxu0 %v725
        %v848 = vpop.f32.mrf.mxu0
        %v849 = vadd.f32 0.0, %v848
        %850 = vdwg.mxu0
        %851 = vmatpush.msra.mxu0 %v790
        %852 = vmatpush.msra.mxu0 %v786
        %853 = vmatpush.msra.mxu0 %v782
        %854 = vmatpush.msra.mxu0 %v778
        %855 = vmatpush.msra.mxu0 %v774
        %856 = vmatpush.msra.mxu0 %v770
        %857 = vmatpush.msra.mxu0 %v766
        %858 = vmatpush.msra.mxu0 %v762
        %859 = vmatpush.msra.mxu0 %v758
        %860 = vmatpush.msra.mxu0 %v754
        %861 = vmatpush.msra.mxu0 %v750
        %862 = vmatpush.msra.mxu0 %v746
        %863 = vmatpush.msra.mxu0 %v742
        %864 = vmatpush.msra.mxu0 %v738
        %865 = vmatpush.msra.mxu0 %v734
        %866 = vmatpush.msra.mxu0 %v730
        %867 = vmatmul.f32.gmra.mxu0 %v725
        %v868 = vpop.f32.mrf.mxu0
        %v869 = vadd.f32 0.0, %v868
        %870 = vdwg.mxu0
        %871 = vst [vmem:[%s221] sm:$0xff] %v809
        %872 = vst [vmem:[%s221 + $0x8] sm:$0xff] %v829
        %873 = vst [vmem:[%s221 + $0x10] sm:$0xff] %v849
        %874 = vst [vmem:[%s221 + $0x18] sm:$0xff] %v869
        %s875 = sand.u32 %s97, 1
        %s876 = scalar_lea.sflag [#allocation4], %s875
        %s877 = sand.u32 %s97, 1
        %s878 = smul.addr %s877, 32
        %s879 = scalar_lea.vmem [#allocation8], %s878
        // Predicated region
        $region45: #{tpu_custom_call.1} parent=31 // pred_check
          %p880 = pneg %p107
        $region46: #{tpu_custom_call.1} parent=31 // pred_check_branch
          %882 = sbr.rel (%p880) target = $region48
        $region47: #{tpu_custom_call.1} parent=31 // pred_region
          %884 = vsyncadd %s876, 0
          %s885 = smul.addr %s21, 4
          %s886 = smul.addr %s885, 8
          %s887 = scalar_lea.hbm %s3, %s886
          %s889 = sshll.u32 %s879, 4
          %s890 = int_to_ptr.vmem [resolvable:$true] %s889
          %s891 = sshll.u32 %s887, 4
          %s892 = int_to_ptr.hbm [resolvable:$true] %s891
          %894 = dma.vmem_to_hbm [thread:$0]  %s890, 512, %s892, %s876
        $region48: #{tpu_custom_call.1} parent=31 // pred_fallthru
          _
      $region32: #{tpu_custom_call.1} parent=5 // pred_fallthru
        _
      %p895 = scmp.le.s32.totalorder 2, %s16
      // Predicated region
      $region49: #{tpu_custom_call.1} parent=5 // pred_check
        %p896 = pneg %p895
      $region50: #{tpu_custom_call.1} parent=5 // pred_check_branch
        %898 = sbr.rel (%p896) target = $region52
      $region51: #{tpu_custom_call.1} parent=5 // pred_region
        %s899 = ssub.s32 %s16, 2
        // Predicated region
        $region53: #{tpu_custom_call.1} parent=51 // pred_check
          %p900 = pneg %p113
        $region54: #{tpu_custom_call.1} parent=51 // pred_check_branch
          %902 = sbr.rel (%p900) target = $region56
        $region55: #{tpu_custom_call.1} parent=51 // pred_region
          %s903 = sand.u32 %s98, 1
          %s904 = scalar_lea.sflag [#allocation4], %s903
          %s905 = sand.u32 %s98, 1
          %s906 = smul.addr %s905, 32
          %s907 = scalar_lea.vmem [#allocation8], %s906
          %909 = dma.done %s904, 512
        $region56: #{tpu_custom_call.1} parent=51 // pred_fallthru
          _
      $region52: #{tpu_custom_call.1} parent=5 // pred_fallthru
        _
    $region6: #{tpu_custom_call.1} parent=1 // loop_footer
      %s20 = sadd.s32 1, %s16
    $region7: #{tpu_custom_call.1} parent=1 // loop_footer_branch
      %15 = sbr.rel target = $region3
    $region8: #{tpu_custom_call.1} parent=1 // loop_exit
      _
    %910 = vsyncpa [#allocation3], 1
    %s911 = scalar_lea.sflag [#allocation3], 1
    %912 = vsyncpa %s911, 1
    %913 = vsyncpa [#allocation6], 1
    %914 = vsyncpa [#allocation4], 1
    %s915 = scalar_lea.sflag [#allocation4], 1
    %916 = vsyncpa %s915, 1

</llo_original>
